<compile_context>
chip_gen: v5e
topology: v5e:2x2
jax: 0.10.0
libtpu: 0.0.40
codegen_flags: <defaults>
</compile_context>

<pallas_src>
import functools

import jax
import jax.numpy as jnp
from jax.experimental import pallas as pl
from jax.experimental.pallas import tpu as pltpu

_LANE = 128
_ROW_ALIGN = 32  # covers f32 (8) / bf16 (16) / int8 (32) sublane packing


def _nl_relu_kernel(x_ref, o_ref, *, beta):
    x = x_ref[...].astype(jnp.float32)
    o_ref[...] = jnp.log1p(beta * jnp.maximum(x, 0.0)).astype(o_ref.dtype)


def _block_budget():
    """Generation-aware per-buffer block-byte target and optional VMEM limit."""
    kind = ""
    try:
        kind = jax.devices()[0].device_kind.lower()
    except Exception:
        pass
    vmem_cap = None
    try:
        vmem_cap = int(pltpu.get_tpu_info().vmem_capacity_bytes)
    except Exception:
        pass
    is_v7 = ("v7" in kind) or (vmem_cap is not None and vmem_cap <= 80 * 1024 * 1024)
    if is_v7:
        # 8 MiB blocks -> 2 bufs x (in+out) = 32 MiB; raise the scoped limit
        # (64 MiB physical per TC) to leave headroom.
        return 8 * 1024 * 1024, 48 * 1024 * 1024
    if "v6" in kind:
        # 4 MiB blocks -> 16 MiB total, well under the 32 MiB scoped default.
        return 4 * 1024 * 1024, None
    # v5e and unknown chips: 2 MiB blocks -> 8 MiB, under v5e's 16 MiB default.
    return 2 * 1024 * 1024, None


def _nl_relu_2d(x2d, beta, target_bytes, vmem_limit):
    rows, cols = x2d.shape
    dtype = x2d.dtype
    itemsize = jnp.dtype(dtype).itemsize
    padded_cols = -(-cols // _LANE) * _LANE  # lane padding inside VMEM

    # Biggest row-block (multiple of _ROW_ALIGN) under the per-buffer budget.
    br = max(_ROW_ALIGN,
             (target_bytes // (padded_cols * itemsize)) // _ROW_ALIGN * _ROW_ALIGN)

    # Megacore (v7x): guarantee >= 2 grid steps when the input is big enough to
    # split, so the "parallel" axis can be sharded across both TensorCores.
    total_bytes = rows * padded_cols * itemsize
    if total_bytes > 2 * 1024 * 1024 and rows >= 2 * _ROW_ALIGN:
        half = -(-rows // 2)
        half = -(-half // _ROW_ALIGN) * _ROW_ALIGN
        br = min(br, half)

    block_rows = rows if rows <= br else br
    grid = (pl.cdiv(rows, block_rows),)

    n = rows * cols
    cost = pl.CostEstimate(flops=2 * n, transcendentals=n,
                           bytes_accessed=2 * n * itemsize)
    cp_kwargs = dict(dimension_semantics=("parallel",))
    if vmem_limit is not None:
        cp_kwargs["vmem_limit_bytes"] = int(vmem_limit)

    return pl.pallas_call(
        functools.partial(_nl_relu_kernel, beta=float(beta)),
        out_shape=jax.ShapeDtypeStruct((rows, cols), dtype),
        grid=grid,
        in_specs=[pl.BlockSpec((block_rows, cols), lambda i: (i, 0))],
        out_specs=pl.BlockSpec((block_rows, cols), lambda i: (i, 0)),
        compiler_params=pltpu.CompilerParams(**cp_kwargs),
        cost_estimate=cost,
    )(x2d)


def nl_relu(x: jax.Array, beta: float = 1.0) -> jax.Array:
    """Apply NLReLU elementwise. Accepts any shape (e.g. NCHW)."""
    orig_shape = x.shape
    n = x.size
    if n == 0:
        return x
    dtype = x.dtype
    itemsize = jnp.dtype(dtype).itemsize
    target_bytes, vmem_limit = _block_budget()

    if n % _LANE == 0:
        # Aligned path: flatten to the widest lane width (multiple of 128)
        # dividing n -> full, unmasked vector stores, free reshape.
        cols = _LANE
        for cand in (4096, 2048, 1024, 512, 256):
            if n % cand == 0:
                cols = cand
                break
        out2d = _nl_relu_2d(x.reshape(-1, cols), beta, target_bytes, vmem_limit)
        return out2d.reshape(orig_shape)

    # Ragged total: keep the original trailing dim as the lane axis and let
    # Pallas mask the partial row/lane tiles. No pad/slice HBM passes (~2N
    # bytes of traffic instead of ~6N with pad+slice).
    cols = orig_shape[-1] if x.ndim >= 2 else n
    rows = n // cols
    padded_cols = -(-cols // _LANE) * _LANE
    if 8 * padded_cols * itemsize <= 16 * 1024 * 1024:
        out2d = _nl_relu_2d(x.reshape(rows, cols), beta, target_bytes, vmem_limit)
        return out2d.reshape(orig_shape)

    # TODO(synk): extremely large non-128-aligned trailing dims fall back to a
    # padded slab (extra pad/slice passes); replace with lane-masked DMA tiles
    # if this path ever becomes hot.
    cols = 1024
    total = -(-n // (8 * cols)) * (8 * cols)
    x2d = jnp.pad(x.reshape(-1), (0, total - n)).reshape(-1, cols)
    out2d = _nl_relu_2d(x2d, beta, target_bytes, vmem_limit)
    return out2d.reshape(-1)[:n].reshape(orig_shape)


if __name__ == "__main__":
    key = jax.random.PRNGKey(0)

    # Primary NCHW example (2*4*16*16 = 2048 elements -> aligned, lane-dense path).
    x = jax.random.normal(key, (2, 4, 16, 16), dtype=jnp.float32)
    y = nl_relu(x)
    jax.block_until_ready(y)
    y_ref = jnp.log1p(jnp.maximum(x, 0.0))
    assert y.shape == x.shape and y.dtype == x.dtype
    assert jnp.allclose(y, y_ref, atol=1e-6, rtol=1e-6)

    # Ragged-size example (945 elements, last dim 9): handled without pad/slice.
    x2 = jax.random.normal(jax.random.PRNGKey(1), (3, 5, 7, 9), dtype=jnp.float32)
    y2 = nl_relu(x2, beta=2.0)
    jax.block_until_ready(y2)
    y2_ref = jnp.log1p(2.0 * jnp.maximum(x2, 0.0))
    assert y2.shape == x2.shape and jnp.allclose(y2, y2_ref, atol=1e-6, rtol=1e-6)

    print("KERNEL_OK")
</pallas_src>

<mosaic_0001>
module attributes {stable_mosaic.version = 11 : i64} {
  func.func @_nl_relu_kernel(%arg0: i32, %arg1: memref<1x2048xf32, #tpu.memory_space<vmem>>, %arg2: memref<1x2048xf32, #tpu.memory_space<vmem>>) attributes {dimension_semantics = [#tpu.dimension_semantics<parallel>], iteration_bounds = array<i64: 1>, scalar_prefetch = 0 : i64, scratch_operands = 0 : i64, tpu.core_type = #tpu.core_type<tc>, window_params = [{transform_indices = @transform_0, window_bounds = array<i64: 1, 2048>}, {transform_indices = @transform_1, window_bounds = array<i64: 1, 2048>}]} {
    %c0 = arith.constant 0 : index
    %c0_0 = arith.constant 0 : index
    %0 = vector.load %arg1[%c0, %c0_0] : memref<1x2048xf32, #tpu.memory_space<vmem>>, vector<1x2048xf32>
    %cst = arith.constant 0.000000e+00 : f32
    %1 = vector.broadcast %cst : f32 to vector<1x2048xf32>
    %2 = arith.maximumf %0, %1 : vector<1x2048xf32>
    %cst_1 = arith.constant 1.000000e+00 : f32
    %3 = vector.broadcast %cst_1 : f32 to vector<1x2048xf32>
    %4 = arith.mulf %3, %2 : vector<1x2048xf32>
    %5 = math.log1p %4 : vector<1x2048xf32>
    %c0_2 = arith.constant 0 : index
    %c0_3 = arith.constant 0 : index
    %6 = vector.load %arg2[%c0_2, %c0_3] : memref<1x2048xf32, #tpu.memory_space<vmem>>, vector<1x2048xf32>
    tpu.vector_store %arg2[%c0_2, %c0_3], %5 {strides = array<i32>} : memref<1x2048xf32, #tpu.memory_space<vmem>>, vector<1x2048xf32>,
    return
  }
  func.func @transform_0(%arg0: i32) -> (i32, i32) {
    %c0_i32 = arith.constant 0 : i32
    %c0_i32_0 = arith.constant 0 : i32
    return %arg0, %c0_i32 : i32, i32
  }
  func.func @transform_1(%arg0: i32) -> (i32, i32) {
    %c0_i32 = arith.constant 0 : i32
    %c0_i32_0 = arith.constant 0 : i32
    return %arg0, %c0_i32 : i32, i32
  }
}

</mosaic_0001>

<llo_original>
// kernel: tpu_custom_call.1
$region0: #{tpu_custom_call.1}
  #allocation0 [shape = 'u32[]', space=smem, size = 0x4, offset = 0x4, fixed_abs, tag = 'smem constant byte address 0x4 - core index']
  #allocation1 [shape = 'u32[72,128]{1,0:T(1,128)}', space=vmem, size = 0x9000, scoped, tag = 'internal scratch']
  %s0 = inlined_call_operand.hbm [shape: f32[1,2048], index: 0, kind: input, shape index: {}]
  %s1 = inlined_call_operand.hbm [shape: f32[1,2048], index: 1, kind: output, shape index: {}]
  %s2 = sld [smem:[#allocation0]]
  $region18: #{tpu_custom_call.1} parent=0
    _
  %s4 = ssub.s32 1, %s2
  %s5 = scalar_select 0, %s4, %s2
  $region1: #{tpu_custom_call.1} parent=0
    #allocation2 [shape = 'u8[8192]{0}', space=vmem, size = 0x2000, scoped, tag = 'input window, operand 0, single buffered']
    #allocation3 [shape = 's32[1]{0}', space=sflag, size = 0x4, scoped, tag = 'scoped memory for tpu_custom_call.1']
    #allocation4 [shape = 's32[1]{0}', space=sflag, size = 0x4, scoped, tag = 'scoped memory for tpu_custom_call.1']
    #allocation5 [shape = 'u8[8192]{0}', space=vmem, size = 0x2000, scoped, tag = 'output window, operand 0, single buffered']
    %6 = vsyncpa [#allocation3], 0
    %7 = vsyncpa [#allocation4], 0
    // Predicated region
    $region2: #{tpu_custom_call.1} parent=1 // pred_check
      _
    $region3: #{tpu_custom_call.1} parent=1 // pred_check_branch
      %9 = sbr.rel (0) target = $region5
    $region4: #{tpu_custom_call.1} parent=1 // pred_region
      %11 = vsyncadd [#allocation3], 0
      %s13 = sshll.u32 %s0, 4
      %s14 = int_to_ptr.hbm [resolvable:$true] %s13
      %s15 = sshll.u32 [#allocation2], 4
      %s16 = int_to_ptr.vmem [resolvable:$true] %s15
      %18 = dma.hbm_to_vmem [thread:$0]  %s14, 256, %s16, [#allocation3]
    $region5: #{tpu_custom_call.1} parent=1 // pred_fallthru
      _
    // Predicated region
    $region6: #{tpu_custom_call.1} parent=1 // pred_check
      _
    $region7: #{tpu_custom_call.1} parent=1 // pred_check_branch
      %20 = sbr.rel (0) target = $region9
    $region8: #{tpu_custom_call.1} parent=1 // pred_region
      %22 = dma.done [#allocation3], 256
    $region9: #{tpu_custom_call.1} parent=1 // pred_fallthru
      _
    %v23 = vld [vmem:[#allocation2] sm:$0xff]
    %v24 = vld [vmem:[#allocation2 + $0x8] sm:$0xff]
    %v25 = vmax.f32 %v23, 0.0
    %v26 = vmax.f32 %v24, 0.0
    %v27 = vadd.f32 %v25, 1.0
    %v28 = vlog2.pop %v27
    %v29 = vmul.f32 %v28, 0.6931472
    %v30 = vmul.f32 -0.5, %v25
    %v31 = vadd.f32 %v30, 1.0
    %v32 = vmul.f32 %v31, %v25
    %v33 = vand.u32 2147483647, %v25
    %vm34 = vcmp.lt.f32.partialorder %v33, 0.0004427343
    %v35 = vsel %vm34, %v32, %v29
    %v36 = vadd.f32 %v26, 1.0
    %v37 = vlog2.pop %v36
    %v38 = vmul.f32 %v37, 0.6931472
    %v39 = vmul.f32 -0.5, %v26
    %v40 = vadd.f32 %v39, 1.0
    %v41 = vmul.f32 %v40, %v26
    %v42 = vand.u32 2147483647, %v26
    %vm43 = vcmp.lt.f32.partialorder %v42, 0.0004427343
    %v44 = vsel %vm43, %v41, %v38
    %45 = vst [vmem:[#allocation5] sm:$0xff] %v35
    %46 = vst [vmem:[#allocation5 + $0x8] sm:$0xff] %v44
    // Predicated region
    $region10: #{tpu_custom_call.1} parent=1 // pred_check
      _
    $region11: #{tpu_custom_call.1} parent=1 // pred_check_branch
      %48 = sbr.rel (0) target = $region13
    $region12: #{tpu_custom_call.1} parent=1 // pred_region
      %50 = vsyncadd [#allocation4], 0
      %s52 = sshll.u32 [#allocation5], 4
      %s53 = int_to_ptr.vmem [resolvable:$true] %s52
      %s54 = sshll.u32 %s1, 4
      %s55 = int_to_ptr.hbm [resolvable:$true] %s54
      %57 = dma.vmem_to_hbm [thread:$0]  %s53, 256, %s55, [#allocation4]
    $region13: #{tpu_custom_call.1} parent=1 // pred_fallthru
      _
    // Predicated region
    $region14: #{tpu_custom_call.1} parent=1 // pred_check
      _
    $region15: #{tpu_custom_call.1} parent=1 // pred_check_branch
      %59 = sbr.rel (0) target = $region17
    $region16: #{tpu_custom_call.1} parent=1 // pred_region
      %61 = dma.done [#allocation4], 256
    $region17: #{tpu_custom_call.1} parent=1 // pred_fallthru
      _
    %62 = vsyncpa [#allocation3], 1
    %63 = vsyncpa [#allocation4], 1

</llo_original>
